<compile_context>
chip_gen: v7x
topology: tpu7x:2x2x1
jax: 0.10.0
libtpu: 0.0.40
codegen_flags: <defaults>
</compile_context>

<pallas_src>
import functools
import math

import jax
import jax.numpy as jnp
from jax.experimental import pallas as pl
from jax.experimental.pallas import tpu as pltpu
import numpy as np


def _build_pe_table(d_model: int, max_seq_len: int) -> jnp.ndarray:
    """Replicates the PyTorch __init__ pe buffer exactly (float32).

    Note: matches the source module, which uses exponent 2*(i+1)/d_model for
    the cos term (not the canonical Vaswani 2*i/d_model).
    """
    assert d_model % 2 == 0, "PositionalEncoder requires an even d_model"
    pe = np.zeros((max_seq_len, d_model), dtype=np.float32)
    for pos in range(max_seq_len):
        for i in range(0, d_model, 2):
            pe[pos, i] = math.sin(pos / 10000 ** (2 * i / d_model))
            pe[pos, i + 1] = math.cos(pos / 10000 ** (2 * (i + 1) / d_model))
    return jnp.asarray(pe)


def _round_up(n: int, q: int) -> int:
    return ((n + q - 1) // q) * q


# Minimum sublane quantum per element size (f32 / bf16 / int8-fp8).
_SUBLANE_QUANTUM = {4: 8, 2: 16, 1: 32}


def _choose_row_block(total_rows: int, hw: int, itemsize: int,
                      target_bytes: int = 4 << 20) -> int:
    """Pick a row-block TM: dtype-aware sublane quantum, ~target_bytes per
    x tile, and at least 2 grid steps whenever the input allows it."""
    q = _SUBLANE_QUANTUM.get(itemsize, 8)
    lane_pad = _round_up(hw, 128)          # VMEM lane footprint of one row
    tm = max(q, (target_bytes // (lane_pad * itemsize)) // q * q)
    if tm >= total_rows:
        if total_rows >= 2 * q:
            # Split the whole extent into (at least) two blocks so v7x's two
            # TensorCores both get work; keeps TM a multiple of the quantum.
            tm = _round_up(pl.cdiv(total_rows, 2), q)
        else:
            tm = total_rows                # tiny input: full-extent block is legal
    return tm


def _pe_kernel(pe_ref, x_ref, o_ref, *, scale):
    # pe_ref: (TM, 1) column; x_ref / o_ref: (TM, HW) lane-dense tile.
    # (TM,1) + (TM,HW) is a cheap lane splat; one vmul + one vadd per vreg.
    o_ref[...] = x_ref[...] * scale + pe_ref[...]


def positional_encoder(x: jnp.ndarray, pe_full: jnp.ndarray) -> jnp.ndarray:
    """x: [B, S, C, H, W]. pe_full: [max_seq_len, C]."""
    B, S, C, H, W = x.shape
    HW = H * W
    total_rows = B * S * C

    # Lane-dense 2-D views: row index (b*S*C + s*C + c) on sublanes, spatial
    # on lanes.  x2 is a contiguous reshape (no copy); pe_col is tiny
    # (total_rows * itemsize bytes), pre-tiled over batch so its block index
    # equals x's row-block index.
    x2 = x.reshape(total_rows, HW)
    pe_col = (jnp.broadcast_to(pe_full[:S, :].reshape(1, S * C), (B, S * C))
              .reshape(total_rows, 1).astype(x.dtype))

    scale = float(math.sqrt(C))
    itemsize = jnp.dtype(x.dtype).itemsize
    tm = _choose_row_block(total_rows, HW, itemsize)
    grid = (pl.cdiv(total_rows, tm),)      # ragged tail handled by Pallas

    # Explicit VMEM budget: double-buffered x-in + out tiles plus the
    # lane-padded (TM,1) pe column (occupies TM*128*itemsize per buffer).
    lane_pad = _round_up(HW, 128)
    x_tile_bytes = tm * lane_pad * itemsize
    pe_tile_bytes = tm * 128 * itemsize
    vmem_budget = 2 * (2 * x_tile_bytes + pe_tile_bytes)
    vmem_limit = int(min(max(vmem_budget + (4 << 20), 32 << 20), 48 << 20))

    n_elem = total_rows * HW
    cost = pl.CostEstimate(
        flops=2 * n_elem,                             # one mul + one add / elem
        transcendentals=0,
        bytes_accessed=2 * n_elem * itemsize + total_rows * itemsize,
    )

    kernel = functools.partial(_pe_kernel, scale=scale)

    # NOTE: if the caller can donate x, input_output_aliases={1: 0} would drop
    # the second HBM allocation; omitted here because the demo reuses x.
    out = pl.pallas_call(
        kernel,
        out_shape=jax.ShapeDtypeStruct((total_rows, HW), x.dtype),
        grid=grid,
        in_specs=[
            # pe column for this row block (same block index as x).
            pl.BlockSpec((tm, 1), lambda i: (i, 0)),
            # x tile: TM rows, full lane extent.
            pl.BlockSpec((tm, HW), lambda i: (i, 0)),
        ],
        out_specs=pl.BlockSpec((tm, HW), lambda i: (i, 0)),
        compiler_params=pltpu.CompilerParams(
            dimension_semantics=("parallel",),
            vmem_limit_bytes=vmem_limit),
        cost_estimate=cost,
    )(pe_col, x2)
    return out.reshape(B, S, C, H, W)


def _reference(x, pe_full):
    B, S, C, H, W = x.shape
    pe = pe_full[:S, :]
    return x * math.sqrt(C) + pe[None, :, :, None, None]


if __name__ == "__main__":
    # Small shapes consistent with the forward: [batch, seq, d_model, H, W]
    B, S, d_model, H, W = 2, 8, 4, 16, 16
    max_seq_len = 80

    key = jax.random.PRNGKey(0)
    x = jax.random.normal(key, (B, S, d_model, H, W), dtype=jnp.float32)

    pe_full = _build_pe_table(d_model, max_seq_len)

    out = positional_encoder(x, pe_full)
    out = jax.block_until_ready(out)

    ref = _reference(x, pe_full)
    np.testing.assert_allclose(np.asarray(out), np.asarray(ref),
                               rtol=1e-6, atol=1e-6)
    print("KERNEL_OK")
</pallas_src>

<mosaic_0001>
module attributes {stable_mosaic.version = 11 : i64} {
  func.func @_pe_kernel(%arg0: i32, %arg1: memref<32x1xf32, #tpu.memory_space<vmem>>, %arg2: memref<32x256xf32, #tpu.memory_space<vmem>>, %arg3: memref<32x256xf32, #tpu.memory_space<vmem>>) attributes {dimension_semantics = [#tpu.dimension_semantics<parallel>], iteration_bounds = array<i64: 2>, scalar_prefetch = 0 : i64, scratch_operands = 0 : i64, tpu.core_type = #tpu.core_type<tc>, window_params = [{transform_indices = @transform_0, window_bounds = array<i64: 32, 1>}, {transform_indices = @transform_1, window_bounds = array<i64: 32, 256>}, {transform_indices = @transform_2, window_bounds = array<i64: 32, 256>}]} {
    %c0 = arith.constant 0 : index
    %c0_0 = arith.constant 0 : index
    %0 = vector.load %arg2[%c0, %c0_0] : memref<32x256xf32, #tpu.memory_space<vmem>>, vector<32x256xf32>
    %cst = arith.constant 2.000000e+00 : f32
    %1 = vector.broadcast %cst : f32 to vector<32x256xf32>
    %2 = arith.mulf %0, %1 : vector<32x256xf32>
    %c0_1 = arith.constant 0 : index
    %c0_2 = arith.constant 0 : index
    %3 = vector.load %arg1[%c0_1, %c0_2] : memref<32x1xf32, #tpu.memory_space<vmem>>, vector<32x1xf32>
    %4 = vector.broadcast %3 : vector<32x1xf32> to vector<32x256xf32>
    %5 = arith.addf %2, %4 : vector<32x256xf32>
    %c0_3 = arith.constant 0 : index
    %c0_4 = arith.constant 0 : index
    %6 = vector.load %arg3[%c0_3, %c0_4] : memref<32x256xf32, #tpu.memory_space<vmem>>, vector<32x256xf32>
    tpu.vector_store %arg3[%c0_3, %c0_4], %5 {strides = array<i32>} : memref<32x256xf32, #tpu.memory_space<vmem>>, vector<32x256xf32>,
    return
  }
  func.func @transform_0(%arg0: i32) -> (i32, i32) {
    %c0_i32 = arith.constant 0 : i32
    %c0_i32_0 = arith.constant 0 : i32
    return %arg0, %c0_i32 : i32, i32
  }
  func.func @transform_1(%arg0: i32) -> (i32, i32) {
    %c0_i32 = arith.constant 0 : i32
    %c0_i32_0 = arith.constant 0 : i32
    return %arg0, %c0_i32 : i32, i32
  }
  func.func @transform_2(%arg0: i32) -> (i32, i32) {
    %c0_i32 = arith.constant 0 : i32
    %c0_i32_0 = arith.constant 0 : i32
    return %arg0, %c0_i32 : i32, i32
  }
}

</mosaic_0001>

<llo_original>
// kernel: tpu_custom_call.1
$region0: #{tpu_custom_call.1}
  #allocation0 [shape = 'u32[]', space=smem, size = 0x4, offset = 0x4, fixed_abs, tag = 'smem constant byte address 0x4 - core index']
  #allocation1 [shape = 'u32[144,128]{1,0:T(1,128)}', space=vmem, size = 0x12000, scoped, tag = 'internal scratch']
  %s0 = inlined_call_operand.vmem [shape: f32[64,1], index: 0, kind: input, shape index: {}]
  %s1 = inlined_call_operand.hbm [shape: f32[64,256], index: 1, kind: input, shape index: {}]
  %s2 = inlined_call_operand.hbm [shape: f32[64,256], index: 2, kind: output, shape index: {}]
  %s3 = sld [smem:[#allocation0]]
  $region45: #{tpu_custom_call.1} parent=0
    _
  %s5 = ssub.s32 1, %s3
  %s6 = scalar_select 0, %s5, %s3
  $region1: #{tpu_custom_call.1} parent=0
    #allocation2 [shape = 'u8[65536]{0}', space=vmem, size = 0x10000, scoped, tag = 'input window, operand 1']
    #allocation3 [shape = 's32[2]{0}', space=sflag, size = 0x8, scoped, tag = 'scoped memory for tpu_custom_call.1']
    #allocation4 [shape = 's32[2]{0}', space=sflag, size = 0x8, scoped, tag = 'scoped memory for tpu_custom_call.1']
    #allocation5 [shape = 'u8[65536]{0}', space=vmem, size = 0x10000, scoped, tag = 'output window, operand 0']
    %7 = vsyncpa [#allocation3], 0
    %s8 = scalar_lea.sflag [#allocation3], 1
    %9 = vsyncpa %s8, 0
    %10 = vsyncpa [#allocation4], 0
    %s11 = scalar_lea.sflag [#allocation4], 1
    %12 = vsyncpa %s11, 0
    loop: start=0, step=1, limit=4
    $region2: #{tpu_custom_call.1} parent=1 // loop_pre_header
      _
    $region3: #{tpu_custom_call.1} parent=1 // loop_header
      %s14 = sphi 0, %s18
      %p15 = scmp.ge.s32.totalorder %s14, 4
      %s24 = sphi 0, %s26
      %s27 = sphi 0, %s24
      %s28 = sphi 0, %s27
      %s44 = sphi 0, %s28
      %s50 = sphi 0, %s52
      %s53 = sphi 0, %s50
      %s54 = sphi 0, %s53
      %s70 = sphi 0, %s54
      %s76 = sphi 0, %s78
      %s79 = sphi 0, %s76
      %s80 = sphi 0, %s79
      %s96 = sphi 0, %s80
    $region4: #{tpu_custom_call.1} parent=1 // loop_header_branch
      %17 = sbr.rel (%p15) target = $region8
    $region5: #{tpu_custom_call.1} parent=1 // loop_body
      %s19 = ssub.s32 %s14, 1
      %s20 = ssub.s32 %s14, 2
      %s21 = sadd.s32 %s14, 1
      %s22 = ssub.s32 %s14, %s21
      %p23 = scmp.eq.s32.totalorder %s22, 0
      %s25 = sadd.s32 %s24, 1
      %s26 = scalar_select %p23, %s24, %s25
      %p29 = pneg %p23
      %p30 = scmp.eq.s32.totalorder %s14, 1
      %p31 = por %p29, %p30
      %p32 = scmp.ne.s32.totalorder %s24, %s27
      %p33 = scmp.eq.s32.totalorder %s14, 0
      %p34 = por %p32, %p33
      %p35 = scmp.ne.s32.totalorder %s24, %s27
      %p36 = scmp.eq.s32.totalorder %s19, 1
      %p37 = por %p35, %p36
      %p38 = scmp.ne.s32.totalorder %s27, %s28
      %p39 = scmp.eq.s32.totalorder %s19, 0
      %p40 = por %p38, %p39
      %p41 = scmp.ne.s32.totalorder %s27, %s28
      %p42 = scmp.eq.s32.totalorder %s20, 1
      %p43 = por %p41, %p42
      %p45 = scmp.ne.s32.totalorder %s28, %s44
      %p46 = scmp.eq.s32.totalorder %s20, 0
      %p47 = por %p45, %p46
      %s48 = ssub.s32 %s14, %s21
      %p49 = scmp.eq.s32.totalorder %s48, 0
      %s51 = sadd.s32 %s50, 1
      %s52 = scalar_select %p49, %s50, %s51
      %p55 = pneg %p49
      %p56 = scmp.eq.s32.totalorder %s14, 1
      %p57 = por %p55, %p56
      %p58 = scmp.ne.s32.totalorder %s50, %s53
      %p59 = scmp.eq.s32.totalorder %s14, 0
      %p60 = por %p58, %p59
      %p61 = scmp.ne.s32.totalorder %s50, %s53
      %p62 = scmp.eq.s32.totalorder %s19, 1
      %p63 = por %p61, %p62
      %p64 = scmp.ne.s32.totalorder %s53, %s54
      %p65 = scmp.eq.s32.totalorder %s19, 0
      %p66 = por %p64, %p65
      %p67 = scmp.ne.s32.totalorder %s53, %s54
      %p68 = scmp.eq.s32.totalorder %s20, 1
      %p69 = por %p67, %p68
      %p71 = scmp.ne.s32.totalorder %s54, %s70
      %p72 = scmp.eq.s32.totalorder %s20, 0
      %p73 = por %p71, %p72
      %s74 = ssub.s32 %s14, %s21
      %p75 = scmp.eq.s32.totalorder %s74, 0
      %s77 = sadd.s32 %s76, 1
      %s78 = scalar_select %p75, %s76, %s77
      %p81 = pneg %p75
      %p82 = scmp.eq.s32.totalorder %s14, 1
      %p83 = por %p81, %p82
      %p84 = scmp.ne.s32.totalorder %s76, %s79
      %p85 = scmp.eq.s32.totalorder %s14, 0
      %p86 = por %p84, %p85
      %p87 = scmp.ne.s32.totalorder %s76, %s79
      %p88 = scmp.eq.s32.totalorder %s19, 1
      %p89 = por %p87, %p88
      %p90 = scmp.ne.s32.totalorder %s79, %s80
      %p91 = scmp.eq.s32.totalorder %s19, 0
      %p92 = por %p90, %p91
      %p93 = scmp.ne.s32.totalorder %s79, %s80
      %p94 = scmp.eq.s32.totalorder %s20, 1
      %p95 = por %p93, %p94
      %p97 = scmp.ne.s32.totalorder %s80, %s96
      %p98 = scmp.eq.s32.totalorder %s20, 0
      %p99 = por %p97, %p98
      %p100 = scmp.le.s32.totalorder 1, %s14
      %p101 = scmp.lt.s32.totalorder %s14, 3
      %p102 = pnand %p100, %p101
      %p103 = pneg %p102
      // Predicated region
      $region9: #{tpu_custom_call.1} parent=5 // pred_check
        _
      $region10: #{tpu_custom_call.1} parent=5 // pred_check_branch
        %105 = sbr.rel (%p102) target = $region12
      $region11: #{tpu_custom_call.1} parent=5 // pred_region
        %s106 = ssub.s32 %s14, 1
      $region12: #{tpu_custom_call.1} parent=5 // pred_fallthru
        _
      %p107 = scmp.lt.s32.totalorder %s14, 2
      // Predicated region
      $region13: #{tpu_custom_call.1} parent=5 // pred_check
        %p108 = pneg %p107
      $region14: #{tpu_custom_call.1} parent=5 // pred_check_branch
        %110 = sbr.rel (%p108) target = $region16
      $region15: #{tpu_custom_call.1} parent=5 // pred_region
        // Predicated region
        $region17: #{tpu_custom_call.1} parent=15 // pred_check
          %p111 = pneg %p34
        $region18: #{tpu_custom_call.1} parent=15 // pred_check_branch
          %113 = sbr.rel (%p111) target = $region20
        $region19: #{tpu_custom_call.1} parent=15 // pred_region
          %s114 = smul.u32 4, %s14
          %p115 = scmp.lt.s32.totalorder %s114, 7
          %s116 = scalar_select %p115, %s114, 7
          %s117 = smul.addr %s116, 8
          %s118 = scalar_lea.vmem %s0, %s117
          %s119 = smul.u32 4, %s14
        $region20: #{tpu_custom_call.1} parent=15 // pred_fallthru
          _
        // Predicated region
        $region21: #{tpu_custom_call.1} parent=15 // pred_check
          %p120 = pneg %p60
        $region22: #{tpu_custom_call.1} parent=15 // pred_check_branch
          %122 = sbr.rel (%p120) target = $region24
        $region23: #{tpu_custom_call.1} parent=15 // pred_region
          %s123 = sand.u32 %s50, 1
          %s124 = scalar_lea.sflag [#allocation3], %s123
          %s125 = sand.u32 %s50, 1
          %s126 = smul.addr %s125, 64
          %s127 = scalar_lea.vmem [#allocation2], %s126
          %s128 = smul.u32 4, %s14
          %s130 = ssub.s32 1024, 1024
          %131 = vsyncadd %s124, %s130
          %s132 = smul.addr %s128, 2
          %s133 = smul.addr %s132, 128
          %s134 = scalar_lea.hbm %s1, %s133
          %s135 = sshll.u32 %s127, 4
          %s136 = int_to_ptr.vmem [resolvable:$true] %s135
          %141 = dma.hbm_to_vmem [thread:$0]  %s134, 1024, %s136, %s124, 256, 256, 16
        $region24: #{tpu_custom_call.1} parent=15 // pred_fallthru
          _
      $region16: #{tpu_custom_call.1} parent=5 // pred_fallthru
        _
      %p142 = scmp.le.s32.totalorder 1, %s14
      %p143 = scmp.lt.s32.totalorder %s14, 3
      %p144 = pnand %p142, %p143
      %p145 = pneg %p144
      // Predicated region
      $region25: #{tpu_custom_call.1} parent=5 // pred_check
        _
      $region26: #{tpu_custom_call.1} parent=5 // pred_check_branch
        %147 = sbr.rel (%p144) target = $region28
      $region27: #{tpu_custom_call.1} parent=5 // pred_region
        %s148 = ssub.s32 %s14, 1
        %s149 = sand.u32 %s53, 1
        %s150 = scalar_lea.sflag [#allocation3], %s149
        %s151 = sand.u32 %s53, 1
        %s152 = smul.addr %s151, 64
        %s153 = scalar_lea.vmem [#allocation2], %s152
        // Predicated region
        $region29: #{tpu_custom_call.1} parent=27 // pred_check
          %p154 = pneg %p66
        $region30: #{tpu_custom_call.1} parent=27 // pred_check_branch
          %156 = sbr.rel (%p154) target = $region32
        $region31: #{tpu_custom_call.1} parent=27 // pred_region
          %157 = dma.done %s150, 1024
        $region32: #{tpu_custom_call.1} parent=27 // pred_fallthru
          _
        %s158 = smul.u32 4, %s19
        %p159 = scmp.lt.s32.totalorder %s158, 7
        %s160 = scalar_select %p159, %s158, 7
        %s161 = smul.addr %s160, 8
        %s162 = scalar_lea.vmem %s0, %s161
        %p163 = pneg %p40
        %p164 = pneg %p37
        %s165 = sand.u32 %s53, 1
        %s166 = scalar_lea.sflag [#allocation3], %s165
        %s167 = sand.u32 %s53, 1
        %s168 = smul.addr %s167, 64
        %s169 = scalar_lea.vmem [#allocation2], %s168
        %p170 = pneg %p66
        %p171 = pneg %p63
        %p172 = pneg %p92
        %p173 = pneg %p89
        %s174 = sand.u32 %s79, 1
        %s175 = scalar_lea.sflag [#allocation4], %s174
        %s176 = sand.u32 %s79, 1
        %s177 = smul.addr %s176, 64
        %s178 = scalar_lea.vmem [#allocation5], %s177
        %s179 = smul.u32 4, %s19
        %p180 = scmp.lt.s32.totalorder %s179, 7
        %s181 = scalar_select %p180, %s179, 7
        %s182 = smul.addr %s181, 8
        %s183 = scalar_lea.vmem %s0, %s182
        %s184 = smul.u32 4, %s19
        %s185 = smul.u32 4, %s19
        %s186 = smul.u32 4, %s19
        %v187 = vld [vmem:[%s153] sm:$0xff]
        %v188 = vld [vmem:[%s153 + $0x8] sm:$0xff]
        %v189 = vld [vmem:[%s153 + $0x10] sm:$0xff]
        %v190 = vld [vmem:[%s153 + $0x18] sm:$0xff]
        %v191 = vld [vmem:[%s153 + $0x20] sm:$0xff]
        %v192 = vld [vmem:[%s153 + $0x28] sm:$0xff]
        %v193 = vld [vmem:[%s153 + $0x30] sm:$0xff]
        %v194 = vld [vmem:[%s153 + $0x38] sm:$0xff]
        %v195 = vmul.f32 %v187, 2.0
        %v196 = vmul.f32 %v188, 2.0
        %v197 = vmul.f32 %v189, 2.0
        %v198 = vmul.f32 %v190, 2.0
        %v199 = vmul.f32 %v191, 2.0
        %v200 = vmul.f32 %v192, 2.0
        %v201 = vmul.f32 %v193, 2.0
        %v202 = vmul.f32 %v194, 2.0
        %v203 = vld [vmem:[%s183] sm:$0xff]
        %v204 = vld [vmem:[%s183 + $0x8] sm:$0xff]
        %v205 = vld [vmem:[%s183 + $0x10] sm:$0xff]
        %v206 = vld [vmem:[%s183 + $0x18] sm:$0xff]
        %208 = vset.pattern.permute.xlu0 0
        %209 = vperm.xlu0 %208, %v203
        %v210 = vpop.permute.xlu0 %209
        %213 = vset.pattern.permute.xlu0 0
        %214 = vperm.xlu0 %213, %v204
        %v215 = vpop.permute.xlu0 %214
        %218 = vset.pattern.permute.xlu0 0
        %219 = vperm.xlu0 %218, %v205
        %v220 = vpop.permute.xlu0 %219
        %223 = vset.pattern.permute.xlu0 0
        %224 = vperm.xlu0 %223, %v206
        %v225 = vpop.permute.xlu0 %224
        %v227 = vadd.f32 %v195, %v210
        %v228 = vadd.f32 %v196, %v210
        %v229 = vadd.f32 %v197, %v215
        %v230 = vadd.f32 %v198, %v215
        %v231 = vadd.f32 %v199, %v220
        %v232 = vadd.f32 %v200, %v220
        %v233 = vadd.f32 %v201, %v225
        %v234 = vadd.f32 %v202, %v225
        %235 = vst [vmem:[%s178] sm:$0xff] %v227
        %236 = vst [vmem:[%s178 + $0x8] sm:$0xff] %v228
        %237 = vst [vmem:[%s178 + $0x10] sm:$0xff] %v229
        %238 = vst [vmem:[%s178 + $0x18] sm:$0xff] %v230
        %239 = vst [vmem:[%s178 + $0x20] sm:$0xff] %v231
        %240 = vst [vmem:[%s178 + $0x28] sm:$0xff] %v232
        %241 = vst [vmem:[%s178 + $0x30] sm:$0xff] %v233
        %242 = vst [vmem:[%s178 + $0x38] sm:$0xff] %v234
        %s243 = sand.u32 %s79, 1
        %s244 = scalar_lea.sflag [#allocation4], %s243
        %s245 = sand.u32 %s79, 1
        %s246 = smul.addr %s245, 64
        %s247 = scalar_lea.vmem [#allocation5], %s246
        // Predicated region
        $region33: #{tpu_custom_call.1} parent=27 // pred_check
          %p248 = pneg %p89
        $region34: #{tpu_custom_call.1} parent=27 // pred_check_branch
          %250 = sbr.rel (%p248) target = $region36
        $region35: #{tpu_custom_call.1} parent=27 // pred_region
          %s251 = smul.u32 4, %s19
          %s253 = ssub.s32 1024, 1024
          %254 = vsyncadd %s244, %s253
          %s255 = smul.addr %s251, 2
          %s256 = smul.addr %s255, 128
          %s257 = scalar_lea.hbm %s2, %s256
          %s258 = sshll.u32 %s247, 4
          %s259 = int_to_ptr.vmem [resolvable:$true] %s258
          %264 = dma.vmem_to_hbm [thread:$0]  %s259, 1024, %s257, %s244, 256, 256, 16
        $region36: #{tpu_custom_call.1} parent=27 // pred_fallthru
          _
      $region28: #{tpu_custom_call.1} parent=5 // pred_fallthru
        _
      %p265 = scmp.le.s32.totalorder 2, %s14
      // Predicated region
      $region37: #{tpu_custom_call.1} parent=5 // pred_check
        %p266 = pneg %p265
      $region38: #{tpu_custom_call.1} parent=5 // pred_check_branch
        %268 = sbr.rel (%p266) target = $region40
      $region39: #{tpu_custom_call.1} parent=5 // pred_region
        %s269 = ssub.s32 %s14, 2
        // Predicated region
        $region41: #{tpu_custom_call.1} parent=39 // pred_check
          %p270 = pneg %p95
        $region42: #{tpu_custom_call.1} parent=39 // pred_check_branch
          %272 = sbr.rel (%p270) target = $region44
        $region43: #{tpu_custom_call.1} parent=39 // pred_region
          %s273 = sand.u32 %s80, 1
          %s274 = scalar_lea.sflag [#allocation4], %s273
          %s275 = sand.u32 %s80, 1
          %s276 = smul.addr %s275, 64
          %s277 = scalar_lea.vmem [#allocation5], %s276
          %278 = dma.done %s274, 1024
        $region44: #{tpu_custom_call.1} parent=39 // pred_fallthru
          _
      $region40: #{tpu_custom_call.1} parent=5 // pred_fallthru
        _
    $region6: #{tpu_custom_call.1} parent=1 // loop_footer
      %s18 = sadd.s32 1, %s14
    $region7: #{tpu_custom_call.1} parent=1 // loop_footer_branch
      %13 = sbr.rel target = $region3
    $region8: #{tpu_custom_call.1} parent=1 // loop_exit
      _
    %279 = vsyncpa [#allocation3], 1
    %s280 = scalar_lea.sflag [#allocation3], 1
    %281 = vsyncpa %s280, 1
    %282 = vsyncpa [#allocation4], 1
    %s283 = scalar_lea.sflag [#allocation4], 1
    %284 = vsyncpa %s283, 1

</llo_original>
